<compile_context>
chip_gen: v5e
topology: v5e:2x2
jax: 0.10.0
libtpu: 0.0.40
codegen_flags: <defaults>
</compile_context>

<pallas_src>
import functools

import jax
import jax.numpy as jnp
from jax import lax
from jax.experimental import pallas as pl
from jax.experimental.pallas import tpu as pltpu


def _round_up(x, m):
    return (x + m - 1) // m * m


def _tile_masks(tile_idx, tm, nc, n_anchor, n_contrast):
    """Validity + self-exclusion masks rebuilt in-kernel from iota (no HBM traffic)."""
    row = tile_idx * tm + lax.broadcasted_iota(jnp.int32, (tm, nc), 0)  # global anchor idx
    col = lax.broadcasted_iota(jnp.int32, (tm, nc), 1)                  # contrast idx
    col_valid = col < n_contrast
    logits_mask = jnp.logical_and(col != row, col_valid)                # drop self + pad cols
    row_valid = (tile_idx * tm
                 + lax.broadcasted_iota(jnp.int32, (tm, 1), 0)) < n_anchor
    return row_valid, col_valid, logits_mask


def _row_losses(sim, pos_mask_f, logits_mask_f, col_valid, row_valid, loss_scale):
    """Folded, numerically-stable per-anchor loss; only [TM, 1] row stats stay live."""
    row_max = jnp.max(jnp.where(col_valid, sim, -jnp.inf), axis=1, keepdims=True)
    denom = jnp.sum(jnp.exp(sim - row_max) * logits_mask_f, axis=1, keepdims=True)
    pos_sum = jnp.sum(pos_mask_f * sim, axis=1, keepdims=True)
    pos_cnt = jnp.sum(pos_mask_f, axis=1, keepdims=True)

    log_z = row_max + jnp.log(denom)
    inv_cnt = pl.reciprocal(jnp.maximum(pos_cnt, 1.0), approx=True)  # EUP slot, ~free
    mean_log_prob_pos = (pos_sum - pos_cnt * log_z) * inv_cnt

    # Guard anchors with no positives (and padded rows) -> contribute exactly 0.
    ok = jnp.logical_and(row_valid, pos_cnt > 0.0)
    return jnp.where(ok, (-loss_scale) * mean_log_prob_pos, 0.0)


def _supcon_gid_kernel(gid_a_ref, gid_c_ref, feat_a_ref, feat_c_ref, out_ref, *,
                       inv_temp, loss_scale, n_anchor, n_contrast):
    # gid_a_ref: [TM, 1] int32, gid_c_ref: [1, NC] int32
    # feat_a_ref: [TM, D], feat_c_ref: [NC, D] (bf16 or f32), out_ref: [TM, 1] f32
    tm = feat_a_ref.shape[0]
    nc = feat_c_ref.shape[0]
    i = pl.program_id(0)

    # [TM, NC] similarities: bf16/f32 operands, f32 accumulation on the MXU.
    sim = lax.dot_general(
        feat_a_ref[...], feat_c_ref[...], (((1,), (1,)), ((), ())),
        preferred_element_type=jnp.float32) * inv_temp

    row_valid, col_valid, logits_mask = _tile_masks(i, tm, nc, n_anchor, n_contrast)
    pos_mask = jnp.logical_and(gid_a_ref[...] == gid_c_ref[...], logits_mask)

    out_ref[...] = _row_losses(sim, pos_mask.astype(jnp.float32),
                               logits_mask.astype(jnp.float32),
                               col_valid, row_valid, loss_scale)


def _supcon_mask_kernel(mask_ref, feat_a_ref, feat_c_ref, out_ref, *,
                        inv_temp, loss_scale, n_anchor, n_contrast):
    # Fallback for a user-supplied (possibly asymmetric / weighted) mask:
    # one [TM, NC] mask tile is streamed per grid step.
    tm = feat_a_ref.shape[0]
    nc = feat_c_ref.shape[0]
    i = pl.program_id(0)

    sim = lax.dot_general(
        feat_a_ref[...], feat_c_ref[...], (((1,), (1,)), ((), ())),
        preferred_element_type=jnp.float32) * inv_temp

    row_valid, col_valid, logits_mask = _tile_masks(i, tm, nc, n_anchor, n_contrast)
    logits_mask_f = logits_mask.astype(jnp.float32)
    pos_mask_f = mask_ref[...] * logits_mask_f

    out_ref[...] = _row_losses(sim, pos_mask_f, logits_mask_f,
                               col_valid, row_valid, loss_scale)


def supcon_loss(features, labels=None, mask=None, *,
                temperature=0.07, contrast_mode="all", base_temperature=0.07,
                compute_dtype=jnp.bfloat16):
    """Pallas TPU implementation of SupConLoss.forward (modes 'all' and 'one')."""
    if features.ndim < 3:
        raise ValueError("`features` needs to be [bsz, n_views, ...]")
    if features.ndim > 3:
        features = features.reshape(features.shape[0], features.shape[1], -1)
    bsz, n_views, dim = features.shape
    if labels is not None and mask is not None:
        raise ValueError("Cannot define both `labels` and `mask`")
    if contrast_mode not in ("all", "one"):
        raise ValueError(f"Unknown mode: {contrast_mode}")

    # contrast_feature: view-major stacking, row index = v * bsz + b
    contrast = jnp.swapaxes(features, 0, 1).reshape(bsz * n_views, dim)
    anchor = contrast if contrast_mode == "all" else features[:, 0, :]
    n_c = bsz * n_views            # contrast columns
    m_a = anchor.shape[0]          # anchor rows (= anchor_count * bsz)

    # ---- group ids (labels / SimCLR) or explicit mask (fallback path) -------
    use_gid = mask is None
    if use_gid:
        if labels is None:
            gid_b = jnp.arange(bsz, dtype=jnp.int32)           # SimCLR: eye(bsz)
        else:
            labels = jnp.asarray(labels).reshape(-1)
            if labels.shape[0] != bsz:
                raise ValueError("Num of labels does not match num of features")
            gid_b = labels.astype(jnp.int32)
        gid_c = jnp.tile(gid_b, n_views)                       # [N]
        gid_a = gid_c if contrast_mode == "all" else gid_b     # [M]
    else:
        a_cnt = n_views if contrast_mode == "all" else 1
        mask_full = jnp.tile(jnp.asarray(mask, jnp.float32), (a_cnt, n_views))

    # ---- tiling / padding ----------------------------------------------------
    n_pad = _round_up(n_c, 128)                 # lane-dense contrast axis
    if m_a <= 512:
        tm = _round_up(m_a, 16)                 # single resident row tile
    else:
        tm = 256                                # fits v7x 64 MiB; fine on v5e/v6e too
    m_pad = _round_up(m_a, tm)
    grid = (m_pad // tm,)

    feat_c = jnp.pad(contrast.astype(compute_dtype), ((0, n_pad - n_c), (0, 0)))
    feat_a = jnp.pad(anchor.astype(compute_dtype), ((0, m_pad - m_a), (0, 0)))

    kernel_kwargs = dict(inv_temp=float(1.0 / temperature),
                         loss_scale=float(temperature / base_temperature),
                         n_anchor=int(m_a), n_contrast=int(n_c))

    feat_specs = [pl.BlockSpec((tm, dim), lambda i: (i, 0)),      # anchor tile (pipelined)
                  pl.BlockSpec((n_pad, dim), lambda i: (0, 0))]   # contrast (VMEM-resident)
    out_spec = pl.BlockSpec((tm, 1), lambda i: (i, 0))
    out_shape = jax.ShapeDtypeStruct((m_pad, 1), jnp.float32)

    # VMEM budget: only raise the scoped limit when the tile math needs it.
    fbytes = jnp.dtype(compute_dtype).itemsize
    mask_bytes = 0 if use_gid else 2 * tm * n_pad * 4
    est = (4 * tm * dim * fbytes + 2 * n_pad * dim * fbytes
           + 6 * tm * n_pad * 4 + mask_bytes + (1 << 20))
    vmem_limit = None if est <= (32 << 20) else min(int(est), 64 << 20)
    cparams = pltpu.CompilerParams(dimension_semantics=("parallel",),
                                   vmem_limit_bytes=vmem_limit)

    if use_gid:
        gid_a_arr = jnp.pad(gid_a, (0, m_pad - m_a),
                            constant_values=-2).reshape(m_pad, 1)
        gid_c_arr = jnp.pad(gid_c, (0, n_pad - n_c),
                            constant_values=-1).reshape(1, n_pad)
        per_anchor = pl.pallas_call(
            functools.partial(_supcon_gid_kernel, **kernel_kwargs),
            out_shape=out_shape,
            grid=grid,
            in_specs=[pl.BlockSpec((tm, 1), lambda i: (i, 0)),
                      pl.BlockSpec((1, n_pad), lambda i: (0, 0))] + feat_specs,
            out_specs=out_spec,
            compiler_params=cparams,
        )(gid_a_arr, gid_c_arr, feat_a, feat_c)
    else:
        mask_padded = jnp.pad(mask_full, ((0, m_pad - m_a), (0, n_pad - n_c)))
        per_anchor = pl.pallas_call(
            functools.partial(_supcon_mask_kernel, **kernel_kwargs),
            out_shape=out_shape,
            grid=grid,
            in_specs=[pl.BlockSpec((tm, n_pad), lambda i: (i, 0))] + feat_specs,
            out_specs=out_spec,
            compiler_params=cparams,
        )(mask_padded, feat_a, feat_c)

    # final mean over all anchors (padded rows contribute exactly 0)
    return jnp.sum(per_anchor) / m_a


def _supcon_ref(features, labels=None, mask=None, temperature=0.07,
                contrast_mode="all", base_temperature=0.07):
    """Pure-JAX f32 reference mirroring the PyTorch forward, for verification."""
    bsz, n_views, dim = features.shape
    if labels is None and mask is None:
        mask_b = jnp.eye(bsz, dtype=jnp.float32)
    elif labels is not None:
        l = labels.reshape(-1, 1)
        mask_b = (l == l.T).astype(jnp.float32)
    else:
        mask_b = jnp.asarray(mask, jnp.float32)
    cf = jnp.swapaxes(features, 0, 1).reshape(bsz * n_views, dim)
    if contrast_mode == "one":
        af, a_cnt = features[:, 0], 1
    else:
        af, a_cnt = cf, n_views
    sim = (af @ cf.T) / temperature
    logits = sim - jnp.max(sim, axis=1, keepdims=True)
    M, N = a_cnt * bsz, bsz * n_views
    mask_full = jnp.tile(mask_b, (a_cnt, n_views))
    logits_mask = jnp.ones((M, N)).at[jnp.arange(M), jnp.arange(M)].set(0.0)
    mask_full = mask_full * logits_mask
    exp_logits = jnp.exp(logits) * logits_mask
    log_prob = logits - jnp.log(exp_logits.sum(1, keepdims=True))
    mlpp = (mask_full * log_prob).sum(1) / mask_full.sum(1)
    return jnp.mean(-(temperature / base_temperature) * mlpp)


if __name__ == "__main__":
    key = jax.random.PRNGKey(0)
    kf, kl = jax.random.split(key)

    bsz, n_views, dim = 8, 2, 32
    feats = jax.random.normal(kf, (bsz, n_views, dim), dtype=jnp.float32)
    feats = feats / jnp.linalg.norm(feats, axis=-1, keepdims=True)  # typical SupCon input
    labels = jax.random.randint(kl, (bsz,), 0, 3)

    # primary path: labels, contrast_mode='all', bf16 MXU matmul
    loss = jax.block_until_ready(supcon_loss(feats, labels=labels))
    ref = _supcon_ref(feats, labels)
    assert jnp.allclose(loss, ref, rtol=3e-2, atol=5e-2), (loss, ref)

    # exact-precision path (f32 operands) — tight check
    loss32 = jax.block_until_ready(
        supcon_loss(feats, labels=labels, compute_dtype=jnp.float32))
    assert jnp.allclose(loss32, ref, rtol=1e-2, atol=1e-2), (loss32, ref)

    # SimCLR degenerate case (no labels, no mask)
    loss_sim = jax.block_until_ready(supcon_loss(feats))
    ref_sim = _supcon_ref(feats)
    assert jnp.allclose(loss_sim, ref_sim, rtol=3e-2, atol=5e-2), (loss_sim, ref_sim)

    # explicit-mask fallback + contrast_mode='one'
    m = (labels.reshape(-1, 1) == labels.reshape(1, -1)).astype(jnp.float32)
    loss_m = jax.block_until_ready(supcon_loss(feats, mask=m, contrast_mode="one"))
    ref_m = _supcon_ref(feats, mask=m, contrast_mode="one")
    assert jnp.allclose(loss_m, ref_m, rtol=3e-2, atol=5e-2), (loss_m, ref_m)

    print("KERNEL_OK")
</pallas_src>

<mosaic_0001>
module attributes {stable_mosaic.version = 11 : i64} {
  func.func @_supcon_gid_kernel(%arg0: i32, %arg1: memref<16x1xi32, #tpu.memory_space<vmem>>, %arg2: memref<1x128xi32, #tpu.memory_space<vmem>>, %arg3: memref<16x32xbf16, #tpu.memory_space<vmem>>, %arg4: memref<128x32xbf16, #tpu.memory_space<vmem>>, %arg5: memref<16x1xf32, #tpu.memory_space<vmem>>) attributes {dimension_semantics = [#tpu.dimension_semantics<parallel>], iteration_bounds = array<i64: 1>, scalar_prefetch = 0 : i64, scratch_operands = 0 : i64, tpu.core_type = #tpu.core_type<tc>, window_params = [{transform_indices = @transform_0, window_bounds = array<i64: 16, 1>}, {pipeline_mode = #tpu.pipeline_mode<synchronous>, transform_indices = @transform_1, window_bounds = array<i64: 1, 128>}, {transform_indices = @transform_2, window_bounds = array<i64: 16, 32>}, {pipeline_mode = #tpu.pipeline_mode<synchronous>, transform_indices = @transform_3, window_bounds = array<i64: 128, 32>}, {transform_indices = @transform_4, window_bounds = array<i64: 16, 1>}]} {
    %c0 = arith.constant 0 : index
    %c0_0 = arith.constant 0 : index
    %0 = vector.load %arg3[%c0, %c0_0] : memref<16x32xbf16, #tpu.memory_space<vmem>>, vector<16x32xbf16>
    %c0_1 = arith.constant 0 : index
    %c0_2 = arith.constant 0 : index
    %1 = vector.load %arg4[%c0_1, %c0_2] : memref<128x32xbf16, #tpu.memory_space<vmem>>, vector<128x32xbf16>
    %cst = arith.constant dense<0.000000e+00> : vector<16x128xf32>
    %2 = tpu.matmul %0, %1, %cst {dimension_numbers = #tpu.dot_dimension_numbers<[1], [1], [0], [0], [0, 0, 1, 0], [], []>} : vector<16x32xbf16>, vector<128x32xbf16>, vector<16x128xf32> -> vector<16x128xf32>
    %cst_3 = arith.constant 14.2857141 : f32
    %3 = vector.broadcast %cst_3 : f32 to vector<16x128xf32>
    %4 = arith.mulf %2, %3 : vector<16x128xf32>
    %c16_i32 = arith.constant 16 : i32
    %5 = arith.muli %arg0, %c16_i32 : i32
    %6 = tpu.iota {dimensions = array<i32: 0>} : vector<16x128xi32>
    %7 = vector.broadcast %5 : i32 to vector<16x128xi32>
    %8 = arith.addi %7, %6 : vector<16x128xi32>
    %9 = tpu.iota {dimensions = array<i32: 1>} : vector<16x128xi32>
    %c16_i32_4 = arith.constant 16 : i32
    %10 = vector.broadcast %c16_i32_4 : i32 to vector<16x128xi32>
    %11 = arith.cmpi slt, %9, %10 : vector<16x128xi32>
    %12 = arith.cmpi ne, %9, %8 : vector<16x128xi32>
    %13 = arith.andi %12, %11 : vector<16x128xi1>
    %c16_i32_5 = arith.constant 16 : i32
    %14 = arith.muli %arg0, %c16_i32_5 : i32
    %15 = tpu.iota {dimensions = array<i32: 0>} : vector<16x1xi32>
    %16 = vector.broadcast %14 : i32 to vector<16x1xi32>
    %17 = arith.addi %16, %15 : vector<16x1xi32>
    %c16_i32_6 = arith.constant 16 : i32
    %18 = vector.broadcast %c16_i32_6 : i32 to vector<16x1xi32>
    %19 = arith.cmpi slt, %17, %18 : vector<16x1xi32>
    %c0_7 = arith.constant 0 : index
    %c0_8 = arith.constant 0 : index
    %20 = vector.load %arg1[%c0_7, %c0_8] : memref<16x1xi32, #tpu.memory_space<vmem>>, vector<16x1xi32>
    %c0_9 = arith.constant 0 : index
    %c0_10 = arith.constant 0 : index
    %21 = vector.load %arg2[%c0_9, %c0_10] : memref<1x128xi32, #tpu.memory_space<vmem>>, vector<1x128xi32>
    %22 = vector.broadcast %20 : vector<16x1xi32> to vector<16x128xi32>
    %23 = vector.broadcast %21 : vector<1x128xi32> to vector<16x128xi32>
    %24 = arith.cmpi eq, %22, %23 : vector<16x128xi32>
    %25 = arith.andi %24, %13 : vector<16x128xi1>
    %26 = arith.extui %25 : vector<16x128xi1> to vector<16x128xi32>
    %27 = arith.sitofp %26 : vector<16x128xi32> to vector<16x128xf32>
    %28 = arith.extui %13 : vector<16x128xi1> to vector<16x128xi32>
    %29 = arith.sitofp %28 : vector<16x128xi32> to vector<16x128xf32>
    %cst_11 = arith.constant 0xFF800000 : f32
    %30 = vector.broadcast %cst_11 : f32 to vector<16x128xf32>
    %31 = arith.select %11, %4, %30 : vector<16x128xi1>, vector<16x128xf32>
    %cst_12 = arith.constant dense<0xFF800000> : vector<16xf32>
    %32 = vector.multi_reduction <maximumf>, %31, %cst_12 [1] : vector<16x128xf32> to vector<16xf32>
    %33 = vector.shape_cast %32 : vector<16xf32> to vector<16x1xf32>
    %34 = vector.broadcast %33 : vector<16x1xf32> to vector<16x128xf32>
    %35 = arith.subf %4, %34 : vector<16x128xf32>
    %36 = math.exp %35 : vector<16x128xf32>
    %37 = arith.mulf %36, %29 : vector<16x128xf32>
    %cst_13 = arith.constant dense<0.000000e+00> : vector<16xf32>
    %38 = vector.multi_reduction <add>, %37, %cst_13 [1] : vector<16x128xf32> to vector<16xf32>
    %39 = vector.shape_cast %38 : vector<16xf32> to vector<16x1xf32>
    %40 = arith.mulf %27, %4 : vector<16x128xf32>
    %cst_14 = arith.constant dense<0.000000e+00> : vector<16xf32>
    %41 = vector.multi_reduction <add>, %40, %cst_14 [1] : vector<16x128xf32> to vector<16xf32>
    %42 = vector.shape_cast %41 : vector<16xf32> to vector<16x1xf32>
    %cst_15 = arith.constant dense<0.000000e+00> : vector<16xf32>
    %43 = vector.multi_reduction <add>, %27, %cst_15 [1] : vector<16x128xf32> to vector<16xf32>
    %44 = vector.shape_cast %43 : vector<16xf32> to vector<16x1xf32>
    %45 = math.log %39 : vector<16x1xf32>
    %46 = arith.addf %33, %45 : vector<16x1xf32>
    %cst_16 = arith.constant 1.000000e+00 : f32
    %47 = vector.broadcast %cst_16 : f32 to vector<16x1xf32>
    %48 = arith.maximumf %44, %47 : vector<16x1xf32>
    %49 = tpu.reciprocal %48 {approx = true} : vector<16x1xf32> -> vector<16x1xf32>
    %50 = arith.mulf %44, %46 : vector<16x1xf32>
    %51 = arith.subf %42, %50 : vector<16x1xf32>
    %52 = arith.mulf %51, %49 : vector<16x1xf32>
    %cst_17 = arith.constant 0.000000e+00 : f32
    %53 = vector.broadcast %cst_17 : f32 to vector<16x1xf32>
    %54 = arith.cmpf ogt, %44, %53 : vector<16x1xf32>
    %55 = arith.andi %19, %54 : vector<16x1xi1>
    %cst_18 = arith.constant -1.000000e+00 : f32
    %56 = vector.broadcast %cst_18 : f32 to vector<16x1xf32>
    %57 = arith.mulf %56, %52 : vector<16x1xf32>
    %cst_19 = arith.constant 0.000000e+00 : f32
    %58 = vector.broadcast %cst_19 : f32 to vector<16x1xf32>
    %59 = arith.select %55, %57, %58 : vector<16x1xi1>, vector<16x1xf32>
    %c0_20 = arith.constant 0 : index
    %c0_21 = arith.constant 0 : index
    %60 = vector.load %arg5[%c0_20, %c0_21] : memref<16x1xf32, #tpu.memory_space<vmem>>, vector<16x1xf32>
    tpu.vector_store %arg5[%c0_20, %c0_21], %59 {strides = array<i32>} : memref<16x1xf32, #tpu.memory_space<vmem>>, vector<16x1xf32>,
    return
  }
  func.func @transform_0(%arg0: i32) -> (i32, i32) {
    %c0_i32 = arith.constant 0 : i32
    %c0_i32_0 = arith.constant 0 : i32
    return %arg0, %c0_i32 : i32, i32
  }
  func.func @transform_1(%arg0: i32) -> (i32, i32) {
    %c0_i32 = arith.constant 0 : i32
    %c0_i32_0 = arith.constant 0 : i32
    %c0_i32_1 = arith.constant 0 : i32
    return %c0_i32, %c0_i32_0 : i32, i32
  }
  func.func @transform_2(%arg0: i32) -> (i32, i32) {
    %c0_i32 = arith.constant 0 : i32
    %c0_i32_0 = arith.constant 0 : i32
    return %arg0, %c0_i32 : i32, i32
  }
  func.func @transform_3(%arg0: i32) -> (i32, i32) {
    %c0_i32 = arith.constant 0 : i32
    %c0_i32_0 = arith.constant 0 : i32
    %c0_i32_1 = arith.constant 0 : i32
    return %c0_i32, %c0_i32_0 : i32, i32
  }
  func.func @transform_4(%arg0: i32) -> (i32, i32) {
    %c0_i32 = arith.constant 0 : i32
    %c0_i32_0 = arith.constant 0 : i32
    return %arg0, %c0_i32 : i32, i32
  }
}

</mosaic_0001>

<llo_original>
// kernel: tpu_custom_call.1
$region0: #{tpu_custom_call.1}
  #allocation0 [shape = 'u32[]', space=smem, size = 0x4, offset = 0x4, fixed_abs, tag = 'smem constant byte address 0x4 - core index']
  #allocation1 [shape = 'u32[72,128]{1,0:T(1,128)}', space=vmem, size = 0x9000, scoped, tag = 'internal scratch']
  %s0 = inlined_call_operand.vmem [shape: s32[16,1], index: 0, kind: input, shape index: {}]
  %s1 = inlined_call_operand.vmem [shape: s32[1,128], index: 1, kind: input, shape index: {}]
  %s2 = inlined_call_operand.vmem [shape: bf16[16,32], index: 2, kind: input, shape index: {}]
  %s3 = inlined_call_operand.vmem [shape: bf16[128,32], index: 3, kind: input, shape index: {}]
  %s4 = inlined_call_operand.vmem [shape: f32[16,1], index: 4, kind: output, shape index: {}]
  %s5 = sld [smem:[#allocation0]]
  $region26: #{tpu_custom_call.1} parent=0
    _
  %s7 = ssub.s32 1, %s5
  %s8 = scalar_select 0, %s7, %s5
  // Predicated region
  $region2: #{tpu_custom_call.1} parent=0 // pred_check
    _
  $region3: #{tpu_custom_call.1} parent=0 // pred_check_branch
    %10 = sbr.rel (0) target = $region5
  $region4: #{tpu_custom_call.1} parent=0 // pred_region
    _
  $region5: #{tpu_custom_call.1} parent=0 // pred_fallthru
    _
  // Predicated region
  $region6: #{tpu_custom_call.1} parent=0 // pred_check
    _
  $region7: #{tpu_custom_call.1} parent=0 // pred_check_branch
    %12 = sbr.rel (0) target = $region9
  $region8: #{tpu_custom_call.1} parent=0 // pred_region
    _
  $region9: #{tpu_custom_call.1} parent=0 // pred_fallthru
    _
  // Predicated region
  $region10: #{tpu_custom_call.1} parent=0 // pred_check
    _
  $region11: #{tpu_custom_call.1} parent=0 // pred_check_branch
    %14 = sbr.rel (0) target = $region13
  $region12: #{tpu_custom_call.1} parent=0 // pred_region
    _
  $region13: #{tpu_custom_call.1} parent=0 // pred_fallthru
    _
  // Predicated region
  $region14: #{tpu_custom_call.1} parent=0 // pred_check
    _
  $region15: #{tpu_custom_call.1} parent=0 // pred_check_branch
    %16 = sbr.rel (0) target = $region17
  $region16: #{tpu_custom_call.1} parent=0 // pred_region
    _
  $region17: #{tpu_custom_call.1} parent=0 // pred_fallthru
    _
  %v17 = vld [vmem:[%s2] sm:$0xf]
  %v18 = vld [vmem:[%s2 + $0x4] sm:$0xf]
  %v19 = vld [vmem:[%s3] sm:$0xf]
  %v20 = vld [vmem:[%s3 + $0x4] sm:$0xf]
  %v21 = vld [vmem:[%s3 + $0x8] sm:$0xf]
  %v22 = vld [vmem:[%s3 + $0xc] sm:$0xf]
  %v23 = vld [vmem:[%s3 + $0x10] sm:$0xf]
  %v24 = vld [vmem:[%s3 + $0x14] sm:$0xf]
  %v25 = vld [vmem:[%s3 + $0x18] sm:$0xf]
  %v26 = vld [vmem:[%s3 + $0x1c] sm:$0xf]
  %v27 = vld [vmem:[%s3 + $0x20] sm:$0xf]
  %v28 = vld [vmem:[%s3 + $0x24] sm:$0xf]
  %v29 = vld [vmem:[%s3 + $0x28] sm:$0xf]
  %v30 = vld [vmem:[%s3 + $0x2c] sm:$0xf]
  %v31 = vld [vmem:[%s3 + $0x30] sm:$0xf]
  %v32 = vld [vmem:[%s3 + $0x34] sm:$0xf]
  %v33 = vld [vmem:[%s3 + $0x38] sm:$0xf]
  %v34 = vld [vmem:[%s3 + $0x3c] sm:$0xf]
  %v37 = vunpack.c.l.b16 %v17
  %v38 = vunpack.c.l.b16 %v18
  %v39 = vpack.c.b16 %v38, %v37
  %v56 = vunpack.c.l.b16 %v19
  %v57 = vunpack.c.l.b16 %v20
  %v58 = vunpack.c.l.b16 %v21
  %v59 = vunpack.c.l.b16 %v22
  %v60 = vunpack.c.l.b16 %v23
  %v61 = vunpack.c.l.b16 %v24
  %v62 = vunpack.c.l.b16 %v25
  %v63 = vunpack.c.l.b16 %v26
  %v64 = vunpack.c.l.b16 %v27
  %v65 = vunpack.c.l.b16 %v28
  %v66 = vunpack.c.l.b16 %v29
  %v67 = vunpack.c.l.b16 %v30
  %v68 = vunpack.c.l.b16 %v31
  %v69 = vunpack.c.l.b16 %v32
  %v70 = vunpack.c.l.b16 %v33
  %v71 = vunpack.c.l.b16 %v34
  %v72 = vpack.c.b16 %v57, %v56
  %v73 = vpack.c.b16 %v59, %v58
  %v74 = vpack.c.b16 %v61, %v60
  %v75 = vpack.c.b16 %v63, %v62
  %v76 = vpack.c.b16 %v65, %v64
  %v77 = vpack.c.b16 %v67, %v66
  %v78 = vpack.c.b16 %v69, %v68
  %v79 = vpack.c.b16 %v71, %v70
  %vm80 = vcmask 261120
  %v82 = vsel %vm80, %v39, 0
  %v85 = vsel %vm80, %v72, 0
  %v88 = vsel %vm80, %v73, 0
  %v91 = vsel %vm80, %v74, 0
  %v94 = vsel %vm80, %v75, 0
  %v97 = vsel %vm80, %v76, 0
  %v100 = vsel %vm80, %v77, 0
  %v103 = vsel %vm80, %v78, 0
  %v106 = vsel %vm80, %v79, 0
  %108 = vmatpush.bf16.xpose.msra.mxu0 %v106
  %109 = vmatpush.bf16.xpose.msra.mxu0 %v103
  %110 = vmatpush.bf16.xpose.msra.mxu0 %v100
  %111 = vmatpush.bf16.xpose.msra.mxu0 %v97
  %112 = vmatpush.bf16.xpose.msra.mxu0 %v94
  %113 = vmatpush.bf16.xpose.msra.mxu0 %v91
  %114 = vmatpush.bf16.xpose.msra.mxu0 %v88
  %115 = vmatpush.bf16.xpose.msra.mxu0 %v85
  %116 = vmatmul.bf16.gmra.mxu0 %v82
  %v117 = vpop.f32.mrf.mxu0
  %v118 = vadd.f32 0.0, %v117
  %v119 = vpop.f32.mrf.mxu0
  %v120 = vadd.f32 0.0, %v119
  %121 = vdwg.mxu0
  %v122 = vmul.f32 %v118, 14.285714
  %v123 = vmul.f32 %v120, 14.285714
  %s124 = smul.u32 0, 16
  %v125 = vlaneseq
  %v126 = vshrl.u32 %v125, 7
  %v127 = vadd.s32 %v126, 8
  %v128 = vstv %s124
  %v129 = vadd.s32 %v128, %v126
  %v130 = vadd.s32 %v128, %v127
  %v131 = vlaneseq
  %v132 = vand.u32 %v131, 127
  %vm133 = vcmp.lt.s32.totalorder %v132, 16
  %vm134 = vcmp.ne.s32.totalorder %v132, %v129
  %vm135 = vcmp.ne.s32.totalorder %v132, %v130
  %vm136 = vmand %vm134, %vm133
  %vm137 = vmand %vm135, %vm133
  %vm138 = vcmp.lt.s32.totalorder %v129, 16
  %vm139 = vcmp.lt.s32.totalorder %v130, 16
  %v140 = vld [vmem:[%s0] sm:$0xff]
  %v141 = vld [vmem:[%s0 + $0x8] sm:$0xff]
  %v142 = vld [vmem:[%s1] sm:$0x1]
  %143 = vset.pattern.permute.xlu0 0
  %144 = vperm.xlu0 %143, %v140
  %v145 = vpop.permute.xlu0 %144
  %146 = vset.pattern.permute.xlu0 0
  %147 = vperm.xlu0 %146, %v141
  %v148 = vpop.permute.xlu0 %147
  %v149 = vperm.slane %v142, 0
  %vm150 = vcmp.eq.s32.totalorder %v145, %v149
  %vm151 = vcmp.eq.s32.totalorder %v148, %v149
  %vm152 = vmand %vm150, %vm136
  %vm153 = vmand %vm151, %vm137
  %v154 = vsel %vm152, 1, 0
  %v155 = vsel %vm153, 1, 0
  %v156 = vcvt.s32.f32 %v154
  %v157 = vcvt.s32.f32 %v155
  %v158 = vsel %vm136, 1, 0
  %v159 = vsel %vm137, 1, 0
  %v160 = vcvt.s32.f32 %v158
  %v161 = vcvt.s32.f32 %v159
  %v162 = vsel %vm133, %v122, -inf
  %v163 = vsel %vm133, %v123, -inf
  %164 = vmax.xlane.f32.xlu0 %v162
  %v165 = vpop.xlane.xlu0 %164
  %166 = vmax.xlane.f32.xlu0 %v163
  %v167 = vpop.xlane.xlu0 %166
  %v168 = vsub.f32 %v122, %v165
  %v169 = vsub.f32 %v123, %v167
  %v170 = vmul.f32 %v168, 1.442695
  %v171 = vpow.pop %v170
  %v172 = vmul.f32 %v169, 1.442695
  %v173 = vpow.pop %v172
  %v174 = vmul.f32 %v171, %v160
  %v175 = vmul.f32 %v173, %v161
  %176 = vadd.xlane.f32.xlu0 %v174
  %v177 = vpop.xlane.xlu0 %176
  %178 = vadd.xlane.f32.xlu0 %v175
  %v179 = vpop.xlane.xlu0 %178
  %v180 = vmul.f32 %v156, %v122
  %v181 = vmul.f32 %v157, %v123
  %182 = vadd.xlane.f32.xlu0 %v180
  %v183 = vpop.xlane.xlu0 %182
  %184 = vadd.xlane.f32.xlu0 %v181
  %v185 = vpop.xlane.xlu0 %184
  %186 = vadd.xlane.f32.xlu0 %v156
  %v187 = vpop.xlane.xlu0 %186
  %188 = vadd.xlane.f32.xlu0 %v157
  %v189 = vpop.xlane.xlu0 %188
  %v190 = vlog2.pop %v177
  %v191 = vmul.f32 %v190, 0.6931472
  %v192 = vlog2.pop %v179
  %v193 = vmul.f32 %v192, 0.6931472
  %v194 = vadd.f32 %v165, %v191
  %v195 = vadd.f32 %v167, %v193
  %v196 = vmax.f32 %v187, 1.0
  %v197 = vmax.f32 %v189, 1.0
  %v198 = vrcp.pop %v196
  %v199 = vrcp.pop %v197
  %v200 = vmul.f32 %v187, %v194
  %v201 = vmul.f32 %v189, %v195
  %v202 = vsub.f32 %v183, %v200
  %v203 = vsub.f32 %v185, %v201
  %v204 = vmul.f32 %v202, %v198
  %v205 = vmul.f32 %v203, %v199
  %vm206 = vcmp.gt.f32.partialorder %v187, 0.0
  %vm207 = vcmp.gt.f32.partialorder %v189, 0.0
  %vm208 = vmand %vm138, %vm206
  %vm209 = vmand %vm139, %vm207
  %v210 = vmul.f32 %v204, -1.0
  %v211 = vmul.f32 %v205, -1.0
  %v212 = vsel %vm208, %v210, 0.0
  %v213 = vsel %vm209, %v211, 0.0
  %vm214 = vcmask 7168
  %215 = vst.msk [vmem:[%s4] sm:$0xff] %vm214, %v212
  %216 = vst.msk [vmem:[%s4 + $0x8] sm:$0xff] %vm214, %v213
  // Predicated region
  $region18: #{tpu_custom_call.1} parent=0 // pred_check
    _
  $region19: #{tpu_custom_call.1} parent=0 // pred_check_branch
    %218 = sbr.rel (0) target = $region21
  $region20: #{tpu_custom_call.1} parent=0 // pred_region
    _
  $region21: #{tpu_custom_call.1} parent=0 // pred_fallthru
    _
  // Predicated region
  $region22: #{tpu_custom_call.1} parent=0 // pred_check
    _
  $region23: #{tpu_custom_call.1} parent=0 // pred_check_branch
    %220 = sbr.rel (0) target = $region25
  $region24: #{tpu_custom_call.1} parent=0 // pred_region
    _
  $region25: #{tpu_custom_call.1} parent=0 // pred_fallthru
    _

</llo_original>
